<compile_context>
chip_gen: v7x
topology: tpu7x:2x2x1
jax: 0.10.0
libtpu: 0.0.40
codegen_flags: <defaults>
</compile_context>

<pallas_src>
import functools

import jax
import jax.numpy as jnp
import numpy as np
from jax.experimental import pallas as pl
from jax.experimental.pallas import tpu as pltpu

_LANE = 128
_VMEM_LIMIT = 32 * 1024 * 1024          # safe scoped-VMEM request on v5e/v6e/v7x


def _round_up(v, m):
    return (v + m - 1) // m * m


def _pick_tile_h(ho, wo, c2, itemsize, target_bytes=2 * 1024 * 1024):
    """Largest TH dividing `ho` such that the (2*TH, Wo, 2C) input block ~<= target."""
    row_bytes = 2 * wo * c2 * itemsize
    th = int(max(1, min(ho, target_bytes // max(1, row_bytes))))
    while ho % th:
        th -= 1
    return th


# --------------------------------------------------------------------------- #
# Kernel 1: per-channel batch statistics (sum, sum of squares) for BatchNorm   #
# --------------------------------------------------------------------------- #
def bn_stats_kernel(x_ref, sum_ref, sumsq_ref):
    # x_ref: (HB, Wo, 2C) block of the column-pair-folded NHWC activation.
    # sum_ref/sumsq_ref: (8, 2C) f32 accumulators (per-sublane partial sums) so the
    # per-step accumulation is plain VPU adds; the single cross-sublane (XLU)
    # collapse happens once in the wrapper.
    @pl.when(jnp.logical_and(pl.program_id(0) == 0, pl.program_id(1) == 0))
    def _():
        sum_ref[...] = jnp.zeros_like(sum_ref)
        sumsq_ref[...] = jnp.zeros_like(sumsq_ref)

    x = x_ref[...].astype(jnp.float32)                    # (HB, Wo, 2C)
    hb, wo, c2 = x.shape
    if (hb * wo) % 8 == 0:
        xr = x.reshape((hb * wo) // 8, 8, c2)             # leading-dim regroup: layout-free
        sum_ref[...] += jnp.sum(xr, axis=0)
        sumsq_ref[...] += jnp.sum(xr * xr, axis=0)
    else:
        # Rare fallback (odd spatial tiling): spread the reduction over the 8
        # accumulator rows (x0.125 then x8 later is exact).
        s = jnp.sum(x, axis=(0, 1)) * 0.125
        ss = jnp.sum(x * x, axis=(0, 1)) * 0.125
        sum_ref[...] += jnp.broadcast_to(s, (8, c2))
        sumsq_ref[...] += jnp.broadcast_to(ss, (8, c2))


# --------------------------------------------------------------------------- #
# Kernel 2: fused BN (folded scale/shift) + ReLU + AvgPool2x2 + 1x1 conv       #
# --------------------------------------------------------------------------- #
def fused_bn_relu_pool_conv_kernel(x_ref, scale2_ref, shift2_ref, w_ref, b_ref, o_ref):
    # x_ref:        (2*TH, Wo, 2C)  column-pair-folded NHWC rows for this tile
    # scale2/shift2:(1, 2C)         folded BN parameters, tiled over both W phases
    # w_ref:        (C, Cout_p)     1x1 conv weight as a matmul (lane-padded)
    # b_ref:        (1, Cout_p)
    # o_ref:        (TH, Wo, Cout_p)
    th2, wo, c2 = x_ref.shape
    th = th2 // 2
    cin = c2 // 2
    cout_p = w_ref.shape[1]

    x = x_ref[...].astype(jnp.float32)
    # BN + ReLU for both W phases in one fused VPU pass.
    a = jnp.maximum(x * scale2_ref[0] + shift2_ref[0], 0.0)        # (2*TH, Wo, 2C)

    # W pooling: the two phases live in lane halves -> one lane-slice add
    # (vreg-aligned and free when C % 128 == 0).
    aw = a[..., :cin] + a[..., cin:]                               # (2*TH, Wo, C)

    # H pooling: adjacent-row pairs via a leading-dim split (layout-free) + VPU add.
    ar = aw.reshape(th, 2, wo, cin)
    pooled = (ar[:, 0] + ar[:, 1]) * 0.25                          # (TH, Wo, C)

    # 1x1 conv == channel matmul on the MXU (pool-before-conv is exact).
    lhs = pooled.reshape(th * wo, cin).astype(w_ref.dtype)
    y = jnp.dot(lhs, w_ref[...], preferred_element_type=jnp.float32)
    y = y + b_ref[0][None, :].astype(jnp.float32)
    o_ref[...] = y.reshape(th, wo, cout_p).astype(o_ref.dtype)


# --------------------------------------------------------------------------- #
# Wrappers                                                                     #
# --------------------------------------------------------------------------- #
def transition_block_forward_nhwc(x, params, *, eps=1e-5, matmul_dtype=jnp.float32):
    """x: (N, H, W, Cin) NHWC.  Returns (N, H/2, W/2, Cout) NHWC."""
    gamma = params["gamma"].astype(jnp.float32)
    beta = params["beta"].astype(jnp.float32)
    conv_w, conv_b = params["conv_w"], params["conv_b"]            # (Cout,Cin,1,1), (Cout,)

    n, h, w, cin = x.shape
    cout = conv_w.shape[0]
    # TODO(synk): odd H/W (AvgPool floor semantics) not handled; DenseNet transitions
    # use even spatial dims.
    assert h % 2 == 0 and w % 2 == 0, "H and W must be even for 2x2 avg-pool"
    ho, wo = h // 2, w // 2
    c2 = 2 * cin

    # Fold W column-pairs into the lane dim: row-major contiguous => free reshape.
    xp = x.reshape(n, h, wo, c2)

    itemsize = jnp.dtype(x.dtype).itemsize
    th = _pick_tile_h(ho, wo, c2, itemsize)                        # H tile (output rows)
    hb = 2 * th                                                    # H tile (input rows)

    # ---- pass 1: batch statistics (training-mode BatchNorm2d) ----
    sum8, sumsq8 = pl.pallas_call(
        bn_stats_kernel,
        out_shape=(jax.ShapeDtypeStruct((8, c2), jnp.float32),
                   jax.ShapeDtypeStruct((8, c2), jnp.float32)),
        grid=(n, ho // th),
        in_specs=[pl.BlockSpec((None, hb, wo, c2), lambda i, j: (i, j, 0, 0))],
        out_specs=(pl.BlockSpec((8, c2), lambda i, j: (0, 0)),
                   pl.BlockSpec((8, c2), lambda i, j: (0, 0))),
        compiler_params=pltpu.CompilerParams(
            dimension_semantics=("arbitrary", "arbitrary"),
            vmem_limit_bytes=_VMEM_LIMIT),
    )(xp)

    s2 = jnp.sum(sum8, axis=0)                                     # (2C,)
    ss2 = jnp.sum(sumsq8, axis=0)
    sum_c = s2[:cin] + s2[cin:]                                    # fold the two W phases
    sumsq_c = ss2[:cin] + ss2[cin:]
    count = jnp.float32(n * h * w)
    mean = sum_c / count
    # Biased variance via E[x^2]-E[x]^2 in f32; clamp >=0 against cancellation.
    var = jnp.maximum(sumsq_c / count - mean * mean, 0.0)
    scale = gamma / jnp.sqrt(var + eps)                            # fold BN into scale/shift
    shift = beta - mean * scale
    scale2 = jnp.concatenate([scale, scale])[None, :]              # (1, 2C)
    shift2 = jnp.concatenate([shift, shift])[None, :]

    # ---- fold conv into a channel matmul; lane-pad Cout for unmasked stores ----
    cout_p = _round_up(cout, _LANE)
    w_mat = jnp.transpose(conv_w.reshape(cout, cin), (1, 0)).astype(jnp.float32)
    b_vec = conv_b.astype(jnp.float32)
    if cout_p != cout:
        w_mat = jnp.pad(w_mat, ((0, 0), (0, cout_p - cout)))
        b_vec = jnp.pad(b_vec, (0, cout_p - cout))
    w_mat = w_mat.astype(matmul_dtype)

    # ---- pass 2: fused BN + ReLU + AvgPool2x2 + 1x1 conv ----
    out_p = pl.pallas_call(
        fused_bn_relu_pool_conv_kernel,
        out_shape=jax.ShapeDtypeStruct((n, ho, wo, cout_p), x.dtype),
        grid=(n, ho // th),
        in_specs=[
            pl.BlockSpec((None, hb, wo, c2), lambda i, j: (i, j, 0, 0)),
            pl.BlockSpec((1, c2), lambda i, j: (0, 0)),
            pl.BlockSpec((1, c2), lambda i, j: (0, 0)),
            pl.BlockSpec((cin, cout_p), lambda i, j: (0, 0)),
            pl.BlockSpec((1, cout_p), lambda i, j: (0, 0)),
        ],
        out_specs=pl.BlockSpec((None, th, wo, cout_p), lambda i, j: (i, j, 0, 0)),
        compiler_params=pltpu.CompilerParams(
            dimension_semantics=("parallel", "parallel"),
            vmem_limit_bytes=_VMEM_LIMIT),
    )(xp, scale2, shift2, w_mat, b_vec[None, :])

    return out_p[..., :cout]


def transition_block_forward(x_nchw, params, *, eps=1e-5, matmul_dtype=jnp.float32):
    """PyTorch-interface wrapper: NCHW in / NCHW out."""
    x = jnp.transpose(x_nchw, (0, 2, 3, 1))                        # NCHW -> NHWC (glue)
    out = transition_block_forward_nhwc(x, params, eps=eps, matmul_dtype=matmul_dtype)
    return jnp.transpose(out, (0, 3, 1, 2))                        # back to NCHW


# --------------------------------------------------------------------------- #
# Pure-JAX reference (mirrors the PyTorch module exactly)                      #
# --------------------------------------------------------------------------- #
def reference_forward(x_nchw, params, eps=1e-5):
    gamma, beta = params["gamma"], params["beta"]
    conv_w, conv_b = params["conv_w"], params["conv_b"]
    cout, cin = conv_w.shape[0], conv_w.shape[1]

    mean = jnp.mean(x_nchw, axis=(0, 2, 3))
    var = jnp.mean((x_nchw - mean[None, :, None, None]) ** 2, axis=(0, 2, 3))
    h = (x_nchw - mean[None, :, None, None]) / jnp.sqrt(var + eps)[None, :, None, None]
    h = h * gamma[None, :, None, None] + beta[None, :, None, None]
    h = jnp.maximum(h, 0.0)
    y = jnp.einsum("nchw,kc->nkhw", h, conv_w.reshape(cout, cin))
    y = y + conv_b[None, :, None, None]
    n, k, hh, ww = y.shape
    y = y.reshape(n, k, hh // 2, 2, ww // 2, 2).mean(axis=(3, 5))
    return y


if __name__ == "__main__":
    key = jax.random.PRNGKey(0)
    k1, k2, k3, k4, k5 = jax.random.split(key, 5)

    N, Cin, H, W = 2, 4, 16, 16
    Cout = 8

    x = jax.random.normal(k1, (N, Cin, H, W), jnp.float32)
    params = dict(
        gamma=1.0 + 0.1 * jax.random.normal(k2, (Cin,), jnp.float32),
        beta=0.1 * jax.random.normal(k3, (Cin,), jnp.float32),
        conv_w=0.1 * jax.random.normal(k4, (Cout, Cin, 1, 1), jnp.float32),
        conv_b=0.1 * jax.random.normal(k5, (Cout,), jnp.float32),
    )

    ref = reference_forward(x, params)

    # f32 MXU path: tight numerical check against the PyTorch-equivalent reference.
    fwd_f32 = jax.jit(functools.partial(transition_block_forward, matmul_dtype=jnp.float32))
    out = jax.block_until_ready(fwd_f32(x, params))
    np.testing.assert_allclose(np.asarray(out), np.asarray(ref), rtol=1e-4, atol=1e-4)
    assert out.shape == (N, Cout, H // 2, W // 2)

    # bf16 MXU path (what realistic Cin/Cout >= 128 transition blocks should use).
    fwd_bf16 = jax.jit(functools.partial(transition_block_forward, matmul_dtype=jnp.bfloat16))
    out_bf16 = jax.block_until_ready(fwd_bf16(x, params))
    np.testing.assert_allclose(np.asarray(out_bf16), np.asarray(ref), rtol=5e-2, atol=5e-2)

    print("KERNEL_OK")
</pallas_src>

<mosaic_0001>
module attributes {stable_mosaic.version = 11 : i64} {
  func.func @bn_stats_kernel(%arg0: i32, %arg1: i32, %arg2: memref<1x16x8x8xf32, #tpu.memory_space<vmem>>, %arg3: memref<8x8xf32, #tpu.memory_space<vmem>>, %arg4: memref<8x8xf32, #tpu.memory_space<vmem>>) attributes {dimension_semantics = [#tpu.dimension_semantics<arbitrary>, #tpu.dimension_semantics<arbitrary>], iteration_bounds = array<i64: 2, 1>, scalar_prefetch = 0 : i64, scratch_operands = 0 : i64, tpu.core_type = #tpu.core_type<tc>, window_params = [{transform_indices = @transform_0, window_bounds = array<i64: 1, 16, 8, 8>}, {pipeline_mode = #tpu.pipeline_mode<synchronous>, transform_indices = @transform_1, window_bounds = array<i64: 8, 8>}, {pipeline_mode = #tpu.pipeline_mode<synchronous>, transform_indices = @transform_2, window_bounds = array<i64: 8, 8>}]} {
    %c0_i32 = arith.constant 0 : i32
    %0 = arith.cmpi eq, %arg0, %c0_i32 : i32
    %c0_i32_0 = arith.constant 0 : i32
    %1 = arith.cmpi eq, %arg1, %c0_i32_0 : i32
    %2 = arith.andi %0, %1 : i1
    %3 = arith.extui %2 : i1 to i32
    %c0_i32_1 = arith.constant 0 : i32
    %4 = arith.cmpi ne, %3, %c0_i32_1 : i32
    scf.if %4 {
      %cst_14 = arith.constant 0.000000e+00 : f32
      %16 = vector.broadcast %cst_14 : f32 to vector<8x8xf32>
      %c0_15 = arith.constant 0 : index
      %c0_16 = arith.constant 0 : index
      %17 = vector.load %arg3[%c0_15, %c0_16] : memref<8x8xf32, #tpu.memory_space<vmem>>, vector<8x8xf32>
      tpu.vector_store %arg3[%c0_15, %c0_16], %16 {strides = array<i32>} : memref<8x8xf32, #tpu.memory_space<vmem>>, vector<8x8xf32>,
      %cst_17 = arith.constant 0.000000e+00 : f32
      %18 = vector.broadcast %cst_17 : f32 to vector<8x8xf32>
      %c0_18 = arith.constant 0 : index
      %c0_19 = arith.constant 0 : index
      %19 = vector.load %arg4[%c0_18, %c0_19] : memref<8x8xf32, #tpu.memory_space<vmem>>, vector<8x8xf32>
      tpu.vector_store %arg4[%c0_18, %c0_19], %18 {strides = array<i32>} : memref<8x8xf32, #tpu.memory_space<vmem>>, vector<8x8xf32>,
    } else {
    }
    %c0 = arith.constant 0 : index
    %c0_2 = arith.constant 0 : index
    %c0_3 = arith.constant 0 : index
    %c0_4 = arith.constant 0 : index
    %5 = vector.load %arg2[%c0, %c0_2, %c0_3, %c0_4] : memref<1x16x8x8xf32, #tpu.memory_space<vmem>>, vector<1x16x8x8xf32>
    %6 = vector.shape_cast %5 : vector<1x16x8x8xf32> to vector<16x8x8xf32>
    %c0_5 = arith.constant 0 : index
    %c0_6 = arith.constant 0 : index
    %7 = vector.load %arg3[%c0_5, %c0_6] : memref<8x8xf32, #tpu.memory_space<vmem>>, vector<8x8xf32>
    %cst = arith.constant dense<0.000000e+00> : vector<8x8xf32>
    %8 = vector.multi_reduction <add>, %6, %cst [0] : vector<16x8x8xf32> to vector<8x8xf32>
    %9 = arith.addf %7, %8 : vector<8x8xf32>
    %c0_7 = arith.constant 0 : index
    %c0_8 = arith.constant 0 : index
    %10 = vector.load %arg3[%c0_7, %c0_8] : memref<8x8xf32, #tpu.memory_space<vmem>>, vector<8x8xf32>
    tpu.vector_store %arg3[%c0_7, %c0_8], %9 {strides = array<i32>} : memref<8x8xf32, #tpu.memory_space<vmem>>, vector<8x8xf32>,
    %c0_9 = arith.constant 0 : index
    %c0_10 = arith.constant 0 : index
    %11 = vector.load %arg4[%c0_9, %c0_10] : memref<8x8xf32, #tpu.memory_space<vmem>>, vector<8x8xf32>
    %12 = arith.mulf %6, %6 : vector<16x8x8xf32>
    %cst_11 = arith.constant dense<0.000000e+00> : vector<8x8xf32>
    %13 = vector.multi_reduction <add>, %12, %cst_11 [0] : vector<16x8x8xf32> to vector<8x8xf32>
    %14 = arith.addf %11, %13 : vector<8x8xf32>
    %c0_12 = arith.constant 0 : index
    %c0_13 = arith.constant 0 : index
    %15 = vector.load %arg4[%c0_12, %c0_13] : memref<8x8xf32, #tpu.memory_space<vmem>>, vector<8x8xf32>
    tpu.vector_store %arg4[%c0_12, %c0_13], %14 {strides = array<i32>} : memref<8x8xf32, #tpu.memory_space<vmem>>, vector<8x8xf32>,
    return
  }
  func.func @transform_0(%arg0: i32, %arg1: i32) -> (i32, i32, i32, i32) {
    %c0_i32 = arith.constant 0 : i32
    %c0_i32_0 = arith.constant 0 : i32
    %c0_i32_1 = arith.constant 0 : i32
    return %arg0, %arg1, %c0_i32, %c0_i32_0 : i32, i32, i32, i32
  }
  func.func @transform_1(%arg0: i32, %arg1: i32) -> (i32, i32) {
    %c0_i32 = arith.constant 0 : i32
    %c0_i32_0 = arith.constant 0 : i32
    %c0_i32_1 = arith.constant 0 : i32
    return %c0_i32, %c0_i32_0 : i32, i32
  }
  func.func @transform_2(%arg0: i32, %arg1: i32) -> (i32, i32) {
    %c0_i32 = arith.constant 0 : i32
    %c0_i32_0 = arith.constant 0 : i32
    %c0_i32_1 = arith.constant 0 : i32
    return %c0_i32, %c0_i32_0 : i32, i32
  }
}

module attributes {stable_mosaic.version = 11 : i64} {
  func.func @fused_bn_relu_pool_conv_kernel(%arg0: i32, %arg1: i32, %arg2: memref<1x16x8x8xf32, #tpu.memory_space<vmem>>, %arg3: memref<1x8xf32, #tpu.memory_space<vmem>>, %arg4: memref<1x8xf32, #tpu.memory_space<vmem>>, %arg5: memref<4x128xf32, #tpu.memory_space<vmem>>, %arg6: memref<1x128xf32, #tpu.memory_space<vmem>>, %arg7: memref<1x8x8x128xf32, #tpu.memory_space<vmem>>) attributes {dimension_semantics = [#tpu.dimension_semantics<parallel>, #tpu.dimension_semantics<parallel>], iteration_bounds = array<i64: 2, 1>, scalar_prefetch = 0 : i64, scratch_operands = 0 : i64, tpu.core_type = #tpu.core_type<tc>, window_params = [{transform_indices = @transform_0, window_bounds = array<i64: 1, 16, 8, 8>}, {pipeline_mode = #tpu.pipeline_mode<synchronous>, transform_indices = @transform_1, window_bounds = array<i64: 1, 8>}, {pipeline_mode = #tpu.pipeline_mode<synchronous>, transform_indices = @transform_2, window_bounds = array<i64: 1, 8>}, {pipeline_mode = #tpu.pipeline_mode<synchronous>, transform_indices = @transform_3, window_bounds = array<i64: 4, 128>}, {pipeline_mode = #tpu.pipeline_mode<synchronous>, transform_indices = @transform_4, window_bounds = array<i64: 1, 128>}, {transform_indices = @transform_5, window_bounds = array<i64: 1, 8, 8, 128>}]} {
    %c0 = arith.constant 0 : index
    %c0_0 = arith.constant 0 : index
    %c0_1 = arith.constant 0 : index
    %c0_2 = arith.constant 0 : index
    %0 = vector.load %arg2[%c0, %c0_0, %c0_1, %c0_2] : memref<1x16x8x8xf32, #tpu.memory_space<vmem>>, vector<1x16x8x8xf32>
    %1 = vector.shape_cast %0 : vector<1x16x8x8xf32> to vector<16x8x8xf32>
    %c0_3 = arith.constant 0 : index
    %c0_4 = arith.constant 0 : index
    %2 = vector.load %arg3[%c0_3, %c0_4] : memref<1x8xf32, #tpu.memory_space<vmem>>, vector<1x8xf32>
    %3 = vector.shape_cast %2 : vector<1x8xf32> to vector<8xf32>
    %4 = vector.shape_cast %3 : vector<8xf32> to vector<1x1x8xf32>
    %5 = vector.broadcast %4 : vector<1x1x8xf32> to vector<16x8x8xf32>
    %6 = arith.mulf %1, %5 : vector<16x8x8xf32>
    %c0_5 = arith.constant 0 : index
    %c0_6 = arith.constant 0 : index
    %7 = vector.load %arg4[%c0_5, %c0_6] : memref<1x8xf32, #tpu.memory_space<vmem>>, vector<1x8xf32>
    %8 = vector.shape_cast %7 : vector<1x8xf32> to vector<8xf32>
    %9 = vector.shape_cast %8 : vector<8xf32> to vector<1x1x8xf32>
    %10 = vector.broadcast %9 : vector<1x1x8xf32> to vector<16x8x8xf32>
    %11 = arith.addf %6, %10 : vector<16x8x8xf32>
    %cst = arith.constant 0.000000e+00 : f32
    %12 = vector.broadcast %cst : f32 to vector<16x8x8xf32>
    %13 = arith.maximumf %11, %12 : vector<16x8x8xf32>
    %14 = vector.extract_strided_slice %13 {offsets = [0, 0, 0], sizes = [16, 8, 4], strides = [1, 1, 1]} : vector<16x8x8xf32> to vector<16x8x4xf32>
    %15 = vector.extract_strided_slice %13 {offsets = [0, 0, 4], sizes = [16, 8, 4], strides = [1, 1, 1]} : vector<16x8x8xf32> to vector<16x8x4xf32>
    %16 = arith.addf %14, %15 : vector<16x8x4xf32>
    %17 = vector.shape_cast %16 : vector<16x8x4xf32> to vector<8x2x8x4xf32>
    %18 = vector.extract_strided_slice %17 {offsets = [0, 0, 0, 0], sizes = [8, 1, 8, 4], strides = [1, 1, 1, 1]} : vector<8x2x8x4xf32> to vector<8x1x8x4xf32>
    %19 = vector.shape_cast %18 : vector<8x1x8x4xf32> to vector<8x8x4xf32>
    %20 = vector.extract_strided_slice %17 {offsets = [0, 1, 0, 0], sizes = [8, 1, 8, 4], strides = [1, 1, 1, 1]} : vector<8x2x8x4xf32> to vector<8x1x8x4xf32>
    %21 = vector.shape_cast %20 : vector<8x1x8x4xf32> to vector<8x8x4xf32>
    %22 = arith.addf %19, %21 : vector<8x8x4xf32>
    %cst_7 = arith.constant 2.500000e-01 : f32
    %23 = vector.broadcast %cst_7 : f32 to vector<8x8x4xf32>
    %24 = arith.mulf %22, %23 : vector<8x8x4xf32>
    %25 = vector.shape_cast %24 : vector<8x8x4xf32> to vector<64x4xf32>
    %c0_8 = arith.constant 0 : index
    %c0_9 = arith.constant 0 : index
    %26 = vector.load %arg5[%c0_8, %c0_9] : memref<4x128xf32, #tpu.memory_space<vmem>>, vector<4x128xf32>
    %cst_10 = arith.constant dense<0.000000e+00> : vector<64x128xf32>
    %27 = tpu.matmul %25, %26, %cst_10 {dimension_numbers = #tpu.dot_dimension_numbers<[1], [0], [0], [1], [0, 0, 1, 1], [], []>} : vector<64x4xf32>, vector<4x128xf32>, vector<64x128xf32> -> vector<64x128xf32>
    %c0_11 = arith.constant 0 : index
    %c0_12 = arith.constant 0 : index
    %28 = vector.load %arg6[%c0_11, %c0_12] : memref<1x128xf32, #tpu.memory_space<vmem>>, vector<1x128xf32>
    %29 = vector.shape_cast %28 : vector<1x128xf32> to vector<128xf32>
    %30 = vector.shape_cast %29 : vector<128xf32> to vector<1x128xf32>
    %31 = vector.broadcast %30 : vector<1x128xf32> to vector<64x128xf32>
    %32 = arith.addf %27, %31 : vector<64x128xf32>
    %33 = vector.shape_cast %32 : vector<64x128xf32> to vector<8x8x128xf32>
    %c0_13 = arith.constant 0 : index
    %c0_14 = arith.constant 0 : index
    %c0_15 = arith.constant 0 : index
    %c0_16 = arith.constant 0 : index
    %34 = vector.load %arg7[%c0_13, %c0_14, %c0_15, %c0_16] : memref<1x8x8x128xf32, #tpu.memory_space<vmem>>, vector<1x8x8x128xf32>
    %35 = vector.shape_cast %34 : vector<1x8x8x128xf32> to vector<8x8x128xf32>
    %36 = vector.shape_cast %33 : vector<8x8x128xf32> to vector<1x8x8x128xf32>
    tpu.vector_store %arg7[%c0_13, %c0_14, %c0_15, %c0_16], %36 {strides = array<i32>} : memref<1x8x8x128xf32, #tpu.memory_space<vmem>>, vector<1x8x8x128xf32>,
    return
  }
  func.func @transform_0(%arg0: i32, %arg1: i32) -> (i32, i32, i32, i32) {
    %c0_i32 = arith.constant 0 : i32
    %c0_i32_0 = arith.constant 0 : i32
    %c0_i32_1 = arith.constant 0 : i32
    return %arg0, %arg1, %c0_i32, %c0_i32_0 : i32, i32, i32, i32
  }
  func.func @transform_1(%arg0: i32, %arg1: i32) -> (i32, i32) {
    %c0_i32 = arith.constant 0 : i32
    %c0_i32_0 = arith.constant 0 : i32
    %c0_i32_1 = arith.constant 0 : i32
    return %c0_i32, %c0_i32_0 : i32, i32
  }
  func.func @transform_2(%arg0: i32, %arg1: i32) -> (i32, i32) {
    %c0_i32 = arith.constant 0 : i32
    %c0_i32_0 = arith.constant 0 : i32
    %c0_i32_1 = arith.constant 0 : i32
    return %c0_i32, %c0_i32_0 : i32, i32
  }
  func.func @transform_3(%arg0: i32, %arg1: i32) -> (i32, i32) {
    %c0_i32 = arith.constant 0 : i32
    %c0_i32_0 = arith.constant 0 : i32
    %c0_i32_1 = arith.constant 0 : i32
    return %c0_i32, %c0_i32_0 : i32, i32
  }
  func.func @transform_4(%arg0: i32, %arg1: i32) -> (i32, i32) {
    %c0_i32 = arith.constant 0 : i32
    %c0_i32_0 = arith.constant 0 : i32
    %c0_i32_1 = arith.constant 0 : i32
    return %c0_i32, %c0_i32_0 : i32, i32
  }
  func.func @transform_5(%arg0: i32, %arg1: i32) -> (i32, i32, i32, i32) {
    %c0_i32 = arith.constant 0 : i32
    %c0_i32_0 = arith.constant 0 : i32
    %c0_i32_1 = arith.constant 0 : i32
    return %arg0, %arg1, %c0_i32, %c0_i32_0 : i32, i32, i32, i32
  }
}

</mosaic_0001>

<llo_original>
// kernel: transition_block_forward.2
$region0: #{transition_block_forward.2}
  #allocation0 [shape = 'u32[]', space=smem, size = 0x4, offset = 0x4, fixed_abs, tag = 'smem constant byte address 0x4 - core index']
  #allocation1 [shape = 'u32[144,128]{1,0:T(1,128)}', space=vmem, size = 0x12000, scoped, tag = 'internal scratch']
  %s0 = inlined_call_operand.vmem [shape: f32[2,16,8,8], index: 0, kind: input, shape index: {}]
  %s1 = inlined_call_operand.vmem [shape: f32[8,8], index: 1, kind: output, shape index: {0}]
  %s2 = inlined_call_operand.vmem [shape: f32[8,8], index: 2, kind: output, shape index: {1}]
  %3 = xla_tuple %s1, %s2
  %s4 = sld [smem:[#allocation0]]
  $region49: #{transition_block_forward.2} parent=0
    _
  %s6 = ssub.s32 1, %s4
  %s7 = scalar_select 0, %s6, %s4
  loop: start=0, step=1, limit=4
  $region2: #{transition_block_forward.2} parent=0 // loop_pre_header
    _
  $region3: #{transition_block_forward.2} parent=0 // loop_header
    %s9 = sphi 0, %s13
    %p10 = scmp.ge.s32.totalorder %s9, 4
    %s16 = sphi 0, %s28
    %s17 = sphi 0, %s24
    %s18 = sphi 0, %s16
    %s19 = sphi 0, %s17
    %s20 = sphi 0, %s18
    %s21 = sphi 0, %s19
    %s33 = sphi 0, %s35
    %s36 = sphi 0, %s33
    %s37 = sphi 0, %s36
    %s53 = sphi 0, %s37
    %s57 = sphi 0, %s57
    %s59 = sphi 0, %s57
    %s60 = sphi 0, %s59
    %s74 = sphi 0, %s60
    %s78 = sphi 0, %s78
    %s80 = sphi 0, %s78
    %s81 = sphi 0, %s80
    %s95 = sphi 0, %s81
  $region4: #{transition_block_forward.2} parent=0 // loop_header_branch
    %12 = sbr.rel (%p10) target = $region8
  $region5: #{transition_block_forward.2} parent=0 // loop_body
    %s14 = ssub.s32 %s9, 1
    %s15 = ssub.s32 %s9, 2
    %s22 = sadd.s32 1, %s17
    %p23 = scmp.ge.s32.totalorder %s22, 1
    %s24 = scalar_select %p23, 0, %s22
    %s25 = sadd.s32 1, %s16
    %s26 = scalar_select %p23, %s25, %s16
    %p27 = scmp.ge.s32.totalorder %s26, 2
    %s28 = scalar_select %p27, 0, %s26
    %s29 = ssub.s32 %s16, %s28
    %s30 = ssub.s32 %s17, %s24
    %s31 = sor.u32 %s29, %s30
    %p32 = scmp.eq.s32.totalorder %s31, 0
    %s34 = sadd.s32 %s33, 1
    %s35 = scalar_select %p32, %s33, %s34
    %p38 = pneg %p32
    %p39 = scmp.eq.s32.totalorder %s9, 1
    %p40 = por %p38, %p39
    %p41 = scmp.ne.s32.totalorder %s33, %s36
    %p42 = scmp.eq.s32.totalorder %s9, 0
    %p43 = por %p41, %p42
    %p44 = scmp.ne.s32.totalorder %s33, %s36
    %p45 = scmp.eq.s32.totalorder %s14, 1
    %p46 = por %p44, %p45
    %p47 = scmp.ne.s32.totalorder %s36, %s37
    %p48 = scmp.eq.s32.totalorder %s14, 0
    %p49 = por %p47, %p48
    %p50 = scmp.ne.s32.totalorder %s36, %s37
    %p51 = scmp.eq.s32.totalorder %s15, 1
    %p52 = por %p50, %p51
    %p54 = scmp.ne.s32.totalorder %s37, %s53
    %p55 = scmp.eq.s32.totalorder %s15, 0
    %p56 = por %p54, %p55
    %s58 = sadd.s32 %s57, 1
    %p61 = scmp.eq.s32.totalorder %s9, 1
    %p62 = scmp.ne.s32.totalorder %s57, %s59
    %p63 = scmp.eq.s32.totalorder %s9, 0
    %p64 = por %p62, %p63
    %p65 = scmp.ne.s32.totalorder %s57, %s59
    %p66 = scmp.eq.s32.totalorder %s14, 1
    %p67 = por %p65, %p66
    %p68 = scmp.ne.s32.totalorder %s59, %s60
    %p69 = scmp.eq.s32.totalorder %s14, 0
    %p70 = por %p68, %p69
    %p71 = scmp.ne.s32.totalorder %s59, %s60
    %p72 = scmp.eq.s32.totalorder %s15, 1
    %p73 = por %p71, %p72
    %p75 = scmp.ne.s32.totalorder %s60, %s74
    %p76 = scmp.eq.s32.totalorder %s15, 0
    %p77 = por %p75, %p76
    %s79 = sadd.s32 %s78, 1
    %p82 = scmp.eq.s32.totalorder %s9, 1
    %p83 = scmp.ne.s32.totalorder %s78, %s80
    %p84 = scmp.eq.s32.totalorder %s9, 0
    %p85 = por %p83, %p84
    %p86 = scmp.ne.s32.totalorder %s78, %s80
    %p87 = scmp.eq.s32.totalorder %s14, 1
    %p88 = por %p86, %p87
    %p89 = scmp.ne.s32.totalorder %s80, %s81
    %p90 = scmp.eq.s32.totalorder %s14, 0
    %p91 = por %p89, %p90
    %p92 = scmp.ne.s32.totalorder %s80, %s81
    %p93 = scmp.eq.s32.totalorder %s15, 1
    %p94 = por %p92, %p93
    %p96 = scmp.ne.s32.totalorder %s81, %s95
    %p97 = scmp.eq.s32.totalorder %s15, 0
    %p98 = por %p96, %p97
    %p99 = scmp.le.s32.totalorder 1, %s9
    %p100 = scmp.lt.s32.totalorder %s9, 3
    %p101 = pnand %p99, %p100
    %p102 = pneg %p101
    // Predicated region
    $region9: #{transition_block_forward.2} parent=5 // pred_check
      _
    $region10: #{transition_block_forward.2} parent=5 // pred_check_branch
      %104 = sbr.rel (%p101) target = $region12
    $region11: #{transition_block_forward.2} parent=5 // pred_region
      %s105 = ssub.s32 %s9, 1
    $region12: #{transition_block_forward.2} parent=5 // pred_fallthru
      _
    %p106 = scmp.lt.s32.totalorder %s9, 2
    // Predicated region
    $region13: #{transition_block_forward.2} parent=5 // pred_check
      %p107 = pneg %p106
    $region14: #{transition_block_forward.2} parent=5 // pred_check_branch
      %109 = sbr.rel (%p107) target = $region16
    $region15: #{transition_block_forward.2} parent=5 // pred_region
      // Predicated region
      $region17: #{transition_block_forward.2} parent=15 // pred_check
        %p110 = pneg %p43
      $region18: #{transition_block_forward.2} parent=15 // pred_check_branch
        %112 = sbr.rel (%p110) target = $region20
      $region19: #{transition_block_forward.2} parent=15 // pred_region
        %s113 = smul.u32 16, %s17
        %p114 = scmp.lt.s32.totalorder %s16, 1
        %s115 = scalar_select %p114, %s16, 1
        %p116 = scmp.lt.s32.totalorder %s113, 15
        %s117 = scalar_select %p116, %s113, 15
        %s118 = smul.addr %s115, 16
        %s119 = sadd.s32 %s117, %s118
        %s120 = smul.addr %s119, 8
        %s121 = scalar_lea.vmem %s0, %s120
        %s122 = smul.u32 16, %s17
      $region20: #{transition_block_forward.2} parent=15 // pred_fallthru
        _
    $region16: #{transition_block_forward.2} parent=5 // pred_fallthru
      _
    %p123 = scmp.le.s32.totalorder 1, %s9
    %p124 = scmp.lt.s32.totalorder %s9, 3
    %p125 = pnand %p123, %p124
    %p126 = pneg %p125
    // Predicated region
    $region21: #{transition_block_forward.2} parent=5 // pred_check
      _
    $region22: #{transition_block_forward.2} parent=5 // pred_check_branch
      %128 = sbr.rel (%p125) target = $region24
    $region23: #{transition_block_forward.2} parent=5 // pred_region
      %s129 = ssub.s32 %s9, 1
      %s130 = smul.u32 16, %s19
      %p131 = scmp.lt.s32.totalorder %s18, 1
      %s132 = scalar_select %p131, %s18, 1
      %p133 = scmp.lt.s32.totalorder %s130, 15
      %s134 = scalar_select %p133, %s130, 15
      %s135 = smul.addr %s132, 16
      %s136 = sadd.s32 %s134, %s135
      %s137 = smul.addr %s136, 8
      %s138 = scalar_lea.vmem %s0, %s137
      %p139 = pneg %p49
      %p140 = pneg %p46
      %p141 = pneg %p70
      %p142 = pneg %p67
      %p143 = pneg %p91
      %p144 = pneg %p88
      %s145 = smul.u32 16, %s19
      %p146 = scmp.lt.s32.totalorder %s18, 1
      %s147 = scalar_select %p146, %s18, 1
      %p148 = scmp.lt.s32.totalorder %s145, 15
      %s149 = scalar_select %p148, %s145, 15
      %s150 = smul.addr %s147, 16
      %s151 = sadd.s32 %s149, %s150
      %s152 = smul.addr %s151, 8
      %s153 = scalar_lea.vmem %s0, %s152
      %s154 = smul.u32 16, %s19
      %p155 = scmp.eq.s32.totalorder %s18, 0
      %p156 = scmp.eq.s32.totalorder %s19, 0
      %p157 = pnand %p155, %p156
      %p158 = pneg %p157
      // Predicated region
      $region25: #{transition_block_forward.2} parent=23 // pred_check
        _
      $region26: #{transition_block_forward.2} parent=23 // pred_check_branch
        %160 = sbr.rel (%p157) target = $region28
      $region27: #{transition_block_forward.2} parent=23 // pred_region
        %vm161 = vcmask 64512
        %162 = vst.msk [vmem:[%s1] sm:$0xff] %vm161, 0.0
        %163 = vst.msk [vmem:[%s2] sm:$0xff] %vm161, 0.0
      $region28: #{transition_block_forward.2} parent=23 // pred_fallthru
        _
      %v164 = vld [vmem:[%s153] sm:$0xff]
      %v165 = vld [vmem:[%s153 + $0x8] sm:$0xff]
      %v166 = vld [vmem:[%s153 + $0x10] sm:$0xff]
      %v167 = vld [vmem:[%s153 + $0x18] sm:$0xff]
      %v168 = vld [vmem:[%s153 + $0x20] sm:$0xff]
      %v169 = vld [vmem:[%s153 + $0x28] sm:$0xff]
      %v170 = vld [vmem:[%s153 + $0x30] sm:$0xff]
      %v171 = vld [vmem:[%s153 + $0x38] sm:$0xff]
      %v172 = vld [vmem:[%s153 + $0x40] sm:$0xff]
      %v173 = vld [vmem:[%s153 + $0x48] sm:$0xff]
      %v174 = vld [vmem:[%s153 + $0x50] sm:$0xff]
      %v175 = vld [vmem:[%s153 + $0x58] sm:$0xff]
      %v176 = vld [vmem:[%s153 + $0x60] sm:$0xff]
      %v177 = vld [vmem:[%s153 + $0x68] sm:$0xff]
      %v178 = vld [vmem:[%s153 + $0x70] sm:$0xff]
      %v179 = vld [vmem:[%s153 + $0x78] sm:$0xff]
      %v180 = vld [vmem:[%s1] sm:$0xff]
      %vm181 = vcmask 64512
      %v182 = vsel %vm181, %v164, 0.0
      %v183 = vsel %vm181, %v165, 0.0
      %v184 = vadd.f32 %v182, %v183
      %v185 = vsel %vm181, %v166, 0.0
      %v186 = vadd.f32 %v184, %v185
      %v187 = vsel %vm181, %v167, 0.0
      %v188 = vadd.f32 %v186, %v187
      %v189 = vsel %vm181, %v168, 0.0
      %v190 = vadd.f32 %v188, %v189
      %v191 = vsel %vm181, %v169, 0.0
      %v192 = vadd.f32 %v190, %v191
      %v193 = vsel %vm181, %v170, 0.0
      %v194 = vadd.f32 %v192, %v193
      %v195 = vsel %vm181, %v171, 0.0
      %v196 = vadd.f32 %v194, %v195
      %v197 = vsel %vm181, %v172, 0.0
      %v198 = vadd.f32 %v196, %v197
      %v199 = vsel %vm181, %v173, 0.0
      %v200 = vadd.f32 %v198, %v199
      %v201 = vsel %vm181, %v174, 0.0
      %v202 = vadd.f32 %v200, %v201
      %v203 = vsel %vm181, %v175, 0.0
      %v204 = vadd.f32 %v202, %v203
      %v205 = vsel %vm181, %v176, 0.0
      %v206 = vadd.f32 %v204, %v205
      %v207 = vsel %vm181, %v177, 0.0
      %v208 = vadd.f32 %v206, %v207
      %v209 = vsel %vm181, %v178, 0.0
      %v210 = vadd.f32 %v208, %v209
      %v211 = vsel %vm181, %v179, 0.0
      %v212 = vadd.f32 %v210, %v211
      %v213 = vadd.f32 %v180, %v212
      %214 = vst.msk [vmem:[%s1] sm:$0xff] %vm181, %v213
      %v215 = vld [vmem:[%s2] sm:$0xff]
      %v216 = vmul.f32 %v164, %v164
      %v217 = vmul.f32 %v165, %v165
      %v218 = vmul.f32 %v166, %v166
      %v219 = vmul.f32 %v167, %v167
      %v220 = vmul.f32 %v168, %v168
      %v221 = vmul.f32 %v169, %v169
      %v222 = vmul.f32 %v170, %v170
      %v223 = vmul.f32 %v171, %v171
      %v224 = vmul.f32 %v172, %v172
      %v225 = vmul.f32 %v173, %v173
      %v226 = vmul.f32 %v174, %v174
      %v227 = vmul.f32 %v175, %v175
      %v228 = vmul.f32 %v176, %v176
      %v229 = vmul.f32 %v177, %v177
      %v230 = vmul.f32 %v178, %v178
      %v231 = vmul.f32 %v179, %v179
      %v232 = vsel %vm181, %v216, 0.0
      %v233 = vsel %vm181, %v217, 0.0
      %v234 = vadd.f32 %v232, %v233
      %v235 = vsel %vm181, %v218, 0.0
      %v236 = vadd.f32 %v234, %v235
      %v237 = vsel %vm181, %v219, 0.0
      %v238 = vadd.f32 %v236, %v237
      %v239 = vsel %vm181, %v220, 0.0
      %v240 = vadd.f32 %v238, %v239
      %v241 = vsel %vm181, %v221, 0.0
      %v242 = vadd.f32 %v240, %v241
      %v243 = vsel %vm181, %v222, 0.0
      %v244 = vadd.f32 %v242, %v243
      %v245 = vsel %vm181, %v223, 0.0
      %v246 = vadd.f32 %v244, %v245
      %v247 = vsel %vm181, %v224, 0.0
      %v248 = vadd.f32 %v246, %v247
      %v249 = vsel %vm181, %v225, 0.0
      %v250 = vadd.f32 %v248, %v249
      %v251 = vsel %vm181, %v226, 0.0
      %v252 = vadd.f32 %v250, %v251
      %v253 = vsel %vm181, %v227, 0.0
      %v254 = vadd.f32 %v252, %v253
      %v255 = vsel %vm181, %v228, 0.0
      %v256 = vadd.f32 %v254, %v255
      %v257 = vsel %vm181, %v229, 0.0
      %v258 = vadd.f32 %v256, %v257
      %v259 = vsel %vm181, %v230, 0.0
      %v260 = vadd.f32 %v258, %v259
      %v261 = vsel %vm181, %v231, 0.0
      %v262 = vadd.f32 %v260, %v261
      %v263 = vadd.f32 %v215, %v262
      %264 = vst.msk [vmem:[%s2] sm:$0xff] %vm181, %v263
      // Predicated region
      $region29: #{transition_block_forward.2} parent=23 // pred_check
        %p265 = pneg %p67
      $region30: #{transition_block_forward.2} parent=23 // pred_check_branch
        %267 = sbr.rel (%p265) target = $region32
      $region31: #{transition_block_forward.2} parent=23 // pred_region
        _
      $region32: #{transition_block_forward.2} parent=23 // pred_fallthru
        _
      // Predicated region
      $region33: #{transition_block_forward.2} parent=23 // pred_check
        %p268 = pneg %p88
      $region34: #{transition_block_forward.2} parent=23 // pred_check_branch
        %270 = sbr.rel (%p268) target = $region36
      $region35: #{transition_block_forward.2} parent=23 // pred_region
        _
      $region36: #{transition_block_forward.2} parent=23 // pred_fallthru
        _
      // Predicated region
      $region37: #{transition_block_forward.2} parent=23 // pred_check
        %p271 = pneg %p67
      $region38: #{transition_block_forward.2} parent=23 // pred_check_branch
        %273 = sbr.rel (%p271) target = $region40
      $region39: #{transition_block_forward.2} parent=23 // pred_region
        _
      $region40: #{transition_block_forward.2} parent=23 // pred_fallthru
        _
      // Predicated region
      $region41: #{transition_block_forward.2} parent=23 // pred_check
        %p274 = pneg %p88
      $region42: #{transition_block_forward.2} parent=23 // pred_check_branch
        %276 = sbr.rel (%p274) target = $region44
      $region43: #{transition_block_forward.2} parent=23 // pred_region
        _
      $region44: #{transition_block_forward.2} parent=23 // pred_fallthru
        _
    $region24: #{transition_block_forward.2} parent=5 // pred_fallthru
      _
    %p277 = scmp.le.s32.totalorder 2, %s9
    // Predicated region
    $region45: #{transition_block_forward.2} parent=5 // pred_check
      %p278 = pneg %p277
    $region46: #{transition_block_forward.2} parent=5 // pred_check_branch
      %280 = sbr.rel (%p278) target = $region48
    $region47: #{transition_block_forward.2} parent=5 // pred_region
      %s281 = ssub.s32 %s9, 2
    $region48: #{transition_block_forward.2} parent=5 // pred_fallthru
      _
  $region6: #{transition_block_forward.2} parent=0 // loop_footer
    %s13 = sadd.s32 1, %s9
  $region7: #{transition_block_forward.2} parent=0 // loop_footer_branch
    %8 = sbr.rel target = $region3
  $region8: #{transition_block_forward.2} parent=0 // loop_exit
    _

// kernel: transition_block_forward.3
$region0: #{transition_block_forward.3}
  #allocation0 [shape = 'u32[]', space=smem, size = 0x4, offset = 0x4, fixed_abs, tag = 'smem constant byte address 0x4 - core index']
  #allocation1 [shape = 'u32[144,128]{1,0:T(1,128)}', space=vmem, size = 0x12000, scoped, tag = 'internal scratch']
  %s0 = inlined_call_operand.vmem [shape: f32[2,16,8,8], index: 0, kind: input, shape index: {}]
  %s1 = inlined_call_operand.vmem [shape: f32[1,8], index: 1, kind: input, shape index: {}]
  %s2 = inlined_call_operand.vmem [shape: f32[1,8], index: 2, kind: input, shape index: {}]
  %s3 = inlined_call_operand.vmem [shape: f32[4,128], index: 3, kind: input, shape index: {}]
  %s4 = inlined_call_operand.vmem [shape: f32[1,128], index: 4, kind: input, shape index: {}]
  %s5 = inlined_call_operand.vmem [shape: f32[2,8,8,128], index: 5, kind: output, shape index: {}]
  %s6 = sld [smem:[#allocation0]]
  $region53: #{transition_block_forward.3} parent=0
    _
  %s8 = ssub.s32 1, %s6
  %s9 = scalar_select 0, %s8, %s6
  loop: start=0, step=1, limit=4
  $region2: #{transition_block_forward.3} parent=0 // loop_pre_header
    _
  $region3: #{transition_block_forward.3} parent=0 // loop_header
    %s11 = sphi 0, %s15
    %p12 = scmp.ge.s32.totalorder %s11, 4
    %s18 = sphi 0, %s30
    %s19 = sphi 0, %s26
    %s20 = sphi 0, %s18
    %s21 = sphi 0, %s19
    %s22 = sphi 0, %s20
    %s23 = sphi 0, %s21
    %s35 = sphi 0, %s37
    %s38 = sphi 0, %s35
    %s39 = sphi 0, %s38
    %s55 = sphi 0, %s39
    %s59 = sphi 0, %s59
    %s61 = sphi 0, %s59
    %s62 = sphi 0, %s61
    %s76 = sphi 0, %s62
    %s80 = sphi 0, %s80
    %s82 = sphi 0, %s80
    %s83 = sphi 0, %s82
    %s97 = sphi 0, %s83
    %s101 = sphi 0, %s101
    %s103 = sphi 0, %s101
    %s104 = sphi 0, %s103
    %s118 = sphi 0, %s104
    %s122 = sphi 0, %s122
    %s124 = sphi 0, %s122
    %s125 = sphi 0, %s124
    %s139 = sphi 0, %s125
    %s147 = sphi 0, %s149
    %s150 = sphi 0, %s147
    %s151 = sphi 0, %s150
    %s167 = sphi 0, %s151
  $region4: #{transition_block_forward.3} parent=0 // loop_header_branch
    %14 = sbr.rel (%p12) target = $region8
  $region5: #{transition_block_forward.3} parent=0 // loop_body
    %s16 = ssub.s32 %s11, 1
    %s17 = ssub.s32 %s11, 2
    %s24 = sadd.s32 1, %s19
    %p25 = scmp.ge.s32.totalorder %s24, 1
    %s26 = scalar_select %p25, 0, %s24
    %s27 = sadd.s32 1, %s18
    %s28 = scalar_select %p25, %s27, %s18
    %p29 = scmp.ge.s32.totalorder %s28, 2
    %s30 = scalar_select %p29, 0, %s28
    %s31 = ssub.s32 %s18, %s30
    %s32 = ssub.s32 %s19, %s26
    %s33 = sor.u32 %s31, %s32
    %p34 = scmp.eq.s32.totalorder %s33, 0
    %s36 = sadd.s32 %s35, 1
    %s37 = scalar_select %p34, %s35, %s36
    %p40 = pneg %p34
    %p41 = scmp.eq.s32.totalorder %s11, 1
    %p42 = por %p40, %p41
    %p43 = scmp.ne.s32.totalorder %s35, %s38
    %p44 = scmp.eq.s32.totalorder %s11, 0
    %p45 = por %p43, %p44
    %p46 = scmp.ne.s32.totalorder %s35, %s38
    %p47 = scmp.eq.s32.totalorder %s16, 1
    %p48 = por %p46, %p47
    %p49 = scmp.ne.s32.totalorder %s38, %s39
    %p50 = scmp.eq.s32.totalorder %s16, 0
    %p51 = por %p49, %p50
    %p52 = scmp.ne.s32.totalorder %s38, %s39
    %p53 = scmp.eq.s32.totalorder %s17, 1
    %p54 = por %p52, %p53
    %p56 = scmp.ne.s32.totalorder %s39, %s55
    %p57 = scmp.eq.s32.totalorder %s17, 0
    %p58 = por %p56, %p57
    %s60 = sadd.s32 %s59, 1
    %p63 = scmp.eq.s32.totalorder %s11, 1
    %p64 = scmp.ne.s32.totalorder %s59, %s61
    %p65 = scmp.eq.s32.totalorder %s11, 0
    %p66 = por %p64, %p65
    %p67 = scmp.ne.s32.totalorder %s59, %s61
    %p68 = scmp.eq.s32.totalorder %s16, 1
    %p69 = por %p67, %p68
    %p70 = scmp.ne.s32.totalorder %s61, %s62
    %p71 = scmp.eq.s32.totalorder %s16, 0
    %p72 = por %p70, %p71
    %p73 = scmp.ne.s32.totalorder %s61, %s62
    %p74 = scmp.eq.s32.totalorder %s17, 1
    %p75 = por %p73, %p74
    %p77 = scmp.ne.s32.totalorder %s62, %s76
    %p78 = scmp.eq.s32.totalorder %s17, 0
    %p79 = por %p77, %p78
    %s81 = sadd.s32 %s80, 1
    %p84 = scmp.eq.s32.totalorder %s11, 1
    %p85 = scmp.ne.s32.totalorder %s80, %s82
    %p86 = scmp.eq.s32.totalorder %s11, 0
    %p87 = por %p85, %p86
    %p88 = scmp.ne.s32.totalorder %s80, %s82
    %p89 = scmp.eq.s32.totalorder %s16, 1
    %p90 = por %p88, %p89
    %p91 = scmp.ne.s32.totalorder %s82, %s83
    %p92 = scmp.eq.s32.totalorder %s16, 0
    %p93 = por %p91, %p92
    %p94 = scmp.ne.s32.totalorder %s82, %s83
    %p95 = scmp.eq.s32.totalorder %s17, 1
    %p96 = por %p94, %p95
    %p98 = scmp.ne.s32.totalorder %s83, %s97
    %p99 = scmp.eq.s32.totalorder %s17, 0
    %p100 = por %p98, %p99
    %s102 = sadd.s32 %s101, 1
    %p105 = scmp.eq.s32.totalorder %s11, 1
    %p106 = scmp.ne.s32.totalorder %s101, %s103
    %p107 = scmp.eq.s32.totalorder %s11, 0
    %p108 = por %p106, %p107
    %p109 = scmp.ne.s32.totalorder %s101, %s103
    %p110 = scmp.eq.s32.totalorder %s16, 1
    %p111 = por %p109, %p110
    %p112 = scmp.ne.s32.totalorder %s103, %s104
    %p113 = scmp.eq.s32.totalorder %s16, 0
    %p114 = por %p112, %p113
    %p115 = scmp.ne.s32.totalorder %s103, %s104
    %p116 = scmp.eq.s32.totalorder %s17, 1
    %p117 = por %p115, %p116
    %p119 = scmp.ne.s32.totalorder %s104, %s118
    %p120 = scmp.eq.s32.totalorder %s17, 0
    %p121 = por %p119, %p120
    %s123 = sadd.s32 %s122, 1
    %p126 = scmp.eq.s32.totalorder %s11, 1
    %p127 = scmp.ne.s32.totalorder %s122, %s124
    %p128 = scmp.eq.s32.totalorder %s11, 0
    %p129 = por %p127, %p128
    %p130 = scmp.ne.s32.totalorder %s122, %s124
    %p131 = scmp.eq.s32.totalorder %s16, 1
    %p132 = por %p130, %p131
    %p133 = scmp.ne.s32.totalorder %s124, %s125
    %p134 = scmp.eq.s32.totalorder %s16, 0
    %p135 = por %p133, %p134
    %p136 = scmp.ne.s32.totalorder %s124, %s125
    %p137 = scmp.eq.s32.totalorder %s17, 1
    %p138 = por %p136, %p137
    %p140 = scmp.ne.s32.totalorder %s125, %s139
    %p141 = scmp.eq.s32.totalorder %s17, 0
    %p142 = por %p140, %p141
    %s143 = ssub.s32 %s18, %s30
    %s144 = ssub.s32 %s19, %s26
    %s145 = sor.u32 %s143, %s144
    %p146 = scmp.eq.s32.totalorder %s145, 0
    %s148 = sadd.s32 %s147, 1
    %s149 = scalar_select %p146, %s147, %s148
    %p152 = pneg %p146
    %p153 = scmp.eq.s32.totalorder %s11, 1
    %p154 = por %p152, %p153
    %p155 = scmp.ne.s32.totalorder %s147, %s150
    %p156 = scmp.eq.s32.totalorder %s11, 0
    %p157 = por %p155, %p156
    %p158 = scmp.ne.s32.totalorder %s147, %s150
    %p159 = scmp.eq.s32.totalorder %s16, 1
    %p160 = por %p158, %p159
    %p161 = scmp.ne.s32.totalorder %s150, %s151
    %p162 = scmp.eq.s32.totalorder %s16, 0
    %p163 = por %p161, %p162
    %p164 = scmp.ne.s32.totalorder %s150, %s151
    %p165 = scmp.eq.s32.totalorder %s17, 1
    %p166 = por %p164, %p165
    %p168 = scmp.ne.s32.totalorder %s151, %s167
    %p169 = scmp.eq.s32.totalorder %s17, 0
    %p170 = por %p168, %p169
    %p171 = scmp.le.s32.totalorder 1, %s11
    %p172 = scmp.lt.s32.totalorder %s11, 3
    %p173 = pnand %p171, %p172
    %p174 = pneg %p173
    // Predicated region
    $region9: #{transition_block_forward.3} parent=5 // pred_check
      _
    $region10: #{transition_block_forward.3} parent=5 // pred_check_branch
      %176 = sbr.rel (%p173) target = $region12
    $region11: #{transition_block_forward.3} parent=5 // pred_region
      %s177 = ssub.s32 %s11, 1
      // Predicated region
      $region13: #{transition_block_forward.3} parent=11 // pred_check
        %p178 = pneg %p72
      $region14: #{transition_block_forward.3} parent=11 // pred_check_branch
        %180 = sbr.rel (%p178) target = $region16
      $region15: #{transition_block_forward.3} parent=11 // pred_region
        _
      $region16: #{transition_block_forward.3} parent=11 // pred_fallthru
        _
      // Predicated region
      $region17: #{transition_block_forward.3} parent=11 // pred_check
        %p181 = pneg %p93
      $region18: #{transition_block_forward.3} parent=11 // pred_check_branch
        %183 = sbr.rel (%p181) target = $region20
      $region19: #{transition_block_forward.3} parent=11 // pred_region
        _
      $region20: #{transition_block_forward.3} parent=11 // pred_fallthru
        _
      // Predicated region
      $region21: #{transition_block_forward.3} parent=11 // pred_check
        %p184 = pneg %p114
      $region22: #{transition_block_forward.3} parent=11 // pred_check_branch
        %186 = sbr.rel (%p184) target = $region24
      $region23: #{transition_block_forward.3} parent=11 // pred_region
        _
      $region24: #{transition_block_forward.3} parent=11 // pred_fallthru
        _
      // Predicated region
      $region25: #{transition_block_forward.3} parent=11 // pred_check
        %p187 = pneg %p135
      $region26: #{transition_block_forward.3} parent=11 // pred_check_branch
        %189 = sbr.rel (%p187) target = $region28
      $region27: #{transition_block_forward.3} parent=11 // pred_region
        _
      $region28: #{transition_block_forward.3} parent=11 // pred_fallthru
        _
    $region12: #{transition_block_forward.3} parent=5 // pred_fallthru
      _
    %p190 = scmp.lt.s32.totalorder %s11, 2
    // Predicated region
    $region29: #{transition_block_forward.3} parent=5 // pred_check
      %p191 = pneg %p190
    $region30: #{transition_block_forward.3} parent=5 // pred_check_branch
      %193 = sbr.rel (%p191) target = $region32
    $region31: #{transition_block_forward.3} parent=5 // pred_region
      // Predicated region
      $region33: #{transition_block_forward.3} parent=31 // pred_check
        %p194 = pneg %p45
      $region34: #{transition_block_forward.3} parent=31 // pred_check_branch
        %196 = sbr.rel (%p194) target = $region36
      $region35: #{transition_block_forward.3} parent=31 // pred_region
        %s197 = smul.u32 16, %s19
        %p198 = scmp.lt.s32.totalorder %s18, 1
        %s199 = scalar_select %p198, %s18, 1
        %p200 = scmp.lt.s32.totalorder %s197, 15
        %s201 = scalar_select %p200, %s197, 15
        %s202 = smul.addr %s199, 16
        %s203 = sadd.s32 %s201, %s202
        %s204 = smul.addr %s203, 8
        %s205 = scalar_lea.vmem %s0, %s204
        %s206 = smul.u32 16, %s19
      $region36: #{transition_block_forward.3} parent=31 // pred_fallthru
        _
    $region32: #{transition_block_forward.3} parent=5 // pred_fallthru
      _
    %p207 = scmp.le.s32.totalorder 1, %s11
    %p208 = scmp.lt.s32.totalorder %s11, 3
    %p209 = pnand %p207, %p208
    %p210 = pneg %p209
    // Predicated region
    $region37: #{transition_block_forward.3} parent=5 // pred_check
      _
    $region38: #{transition_block_forward.3} parent=5 // pred_check_branch
      %212 = sbr.rel (%p209) target = $region40
    $region39: #{transition_block_forward.3} parent=5 // pred_region
      %s213 = ssub.s32 %s11, 1
      %s214 = smul.u32 16, %s21
      %p215 = scmp.lt.s32.totalorder %s20, 1
      %s216 = scalar_select %p215, %s20, 1
      %p217 = scmp.lt.s32.totalorder %s214, 15
      %s218 = scalar_select %p217, %s214, 15
      %s219 = smul.addr %s216, 16
      %s220 = sadd.s32 %s218, %s219
      %s221 = smul.addr %s220, 8
      %s222 = scalar_lea.vmem %s0, %s221
      %p223 = pneg %p51
      %p224 = pneg %p48
      %p225 = pneg %p72
      %p226 = pneg %p69
      %p227 = pneg %p93
      %p228 = pneg %p90
      %p229 = pneg %p114
      %p230 = pneg %p111
      %p231 = pneg %p135
      %p232 = pneg %p132
      %p233 = pneg %p163
      %p234 = pneg %p160
      %s235 = smul.u32 8, %s21
      %p236 = scmp.lt.s32.totalorder %s20, 1
      %s237 = scalar_select %p236, %s20, 1
      %p238 = scmp.lt.s32.totalorder %s235, 7
      %s239 = scalar_select %p238, %s235, 7
      %s240 = smul.addr %s237, 8
      %s241 = sadd.s32 %s239, %s240
      %s242 = smul.addr %s241, 8
      %s243 = scalar_lea.vmem %s5, %s242
      %s244 = smul.u32 16, %s21
      %p245 = scmp.lt.s32.totalorder %s20, 1
      %s246 = scalar_select %p245, %s20, 1
      %p247 = scmp.lt.s32.totalorder %s244, 15
      %s248 = scalar_select %p247, %s244, 15
      %s249 = smul.addr %s246, 16
      %s250 = sadd.s32 %s248, %s249
      %s251 = smul.addr %s250, 8
      %s252 = scalar_lea.vmem %s0, %s251
      %s253 = smul.u32 16, %s21
      %s254 = smul.u32 8, %s21
      %p255 = scmp.lt.s32.totalorder %s20, 1
      %s256 = scalar_select %p255, %s20, 1
      %p257 = scmp.lt.s32.totalorder %s254, 7
      %s258 = scalar_select %p257, %s254, 7
      %s259 = smul.addr %s256, 8
      %s260 = sadd.s32 %s258, %s259
      %s261 = smul.addr %s260, 8
      %s262 = scalar_lea.vmem %s5, %s261
      %s263 = smul.u32 8, %s21
      %v264 = vld [vmem:[%s252] sm:$0xff]
      %v265 = vld [vmem:[%s252 + $0x8] sm:$0xff]
      %v266 = vld [vmem:[%s252 + $0x10] sm:$0xff]
      %v267 = vld [vmem:[%s252 + $0x18] sm:$0xff]
      %v268 = vld [vmem:[%s252 + $0x20] sm:$0xff]
      %v269 = vld [vmem:[%s252 + $0x28] sm:$0xff]
      %v270 = vld [vmem:[%s252 + $0x30] sm:$0xff]
      %v271 = vld [vmem:[%s252 + $0x38] sm:$0xff]
      %v272 = vld [vmem:[%s252 + $0x40] sm:$0xff]
      %v273 = vld [vmem:[%s252 + $0x48] sm:$0xff]
      %v274 = vld [vmem:[%s252 + $0x50] sm:$0xff]
      %v275 = vld [vmem:[%s252 + $0x58] sm:$0xff]
      %v276 = vld [vmem:[%s252 + $0x60] sm:$0xff]
      %v277 = vld [vmem:[%s252 + $0x68] sm:$0xff]
      %v278 = vld [vmem:[%s252 + $0x70] sm:$0xff]
      %v279 = vld [vmem:[%s252 + $0x78] sm:$0xff]
      %v280 = vld [vmem:[%s1] sm:$0x1]
      %v282 = vlaneseq
      %v283 = vshrl.u32 %v282, 7
      %v284 = vsub.s32 0, %v283
      %v285 = vrot.slane %v280, %v284
      %v287 = vmul.f32 %v264, %v285
      %v288 = vmul.f32 %v265, %v285
      %v289 = vmul.f32 %v266, %v285
      %v290 = vmul.f32 %v267, %v285
      %v291 = vmul.f32 %v268, %v285
      %v292 = vmul.f32 %v269, %v285
      %v293 = vmul.f32 %v270, %v285
      %v294 = vmul.f32 %v271, %v285
      %v295 = vmul.f32 %v272, %v285
      %v296 = vmul.f32 %v273, %v285
      %v297 = vmul.f32 %v274, %v285
      %v298 = vmul.f32 %v275, %v285
      %v299 = vmul.f32 %v276, %v285
      %v300 = vmul.f32 %v277, %v285
      %v301 = vmul.f32 %v278, %v285
      %v302 = vmul.f32 %v279, %v285
      %v303 = vld [vmem:[%s2] sm:$0x1]
      %v305 = vlaneseq
      %v306 = vshrl.u32 %v305, 7
      %v307 = vsub.s32 0, %v306
      %v308 = vrot.slane %v303, %v307
      %v310 = vadd.f32 %v287, %v308
      %v311 = vadd.f32 %v288, %v308
      %v312 = vadd.f32 %v289, %v308
      %v313 = vadd.f32 %v290, %v308
      %v314 = vadd.f32 %v291, %v308
      %v315 = vadd.f32 %v292, %v308
      %v316 = vadd.f32 %v293, %v308
      %v317 = vadd.f32 %v294, %v308
      %v318 = vadd.f32 %v295, %v308
      %v319 = vadd.f32 %v296, %v308
      %v320 = vadd.f32 %v297, %v308
      %v321 = vadd.f32 %v298, %v308
      %v322 = vadd.f32 %v299, %v308
      %v323 = vadd.f32 %v300, %v308
      %v324 = vadd.f32 %v301, %v308
      %v325 = vadd.f32 %v302, %v308
      %v326 = vmax.f32 %v310, 0.0
      %v327 = vmax.f32 %v311, 0.0
      %v328 = vmax.f32 %v312, 0.0
      %v329 = vmax.f32 %v313, 0.0
      %v330 = vmax.f32 %v314, 0.0
      %v331 = vmax.f32 %v315, 0.0
      %v332 = vmax.f32 %v316, 0.0
      %v333 = vmax.f32 %v317, 0.0
      %v334 = vmax.f32 %v318, 0.0
      %v335 = vmax.f32 %v319, 0.0
      %v336 = vmax.f32 %v320, 0.0
      %v337 = vmax.f32 %v321, 0.0
      %v338 = vmax.f32 %v322, 0.0
      %v339 = vmax.f32 %v323, 0.0
      %v340 = vmax.f32 %v324, 0.0
      %v341 = vmax.f32 %v325, 0.0
      %358 = vrot.lane.b32.xlu0 %v326, 124
      %v359 = vpop.permute.xlu0 %358
      %360 = vrot.lane.b32.xlu0 %v327, 124
      %v361 = vpop.permute.xlu0 %360
      %362 = vrot.lane.b32.xlu0 %v328, 124
      %v363 = vpop.permute.xlu0 %362
      %364 = vrot.lane.b32.xlu0 %v329, 124
      %v365 = vpop.permute.xlu0 %364
      %366 = vrot.lane.b32.xlu0 %v330, 124
      %v367 = vpop.permute.xlu0 %366
      %368 = vrot.lane.b32.xlu0 %v331, 124
      %v369 = vpop.permute.xlu0 %368
      %370 = vrot.lane.b32.xlu0 %v332, 124
      %v371 = vpop.permute.xlu0 %370
      %372 = vrot.lane.b32.xlu0 %v333, 124
      %v373 = vpop.permute.xlu0 %372
      %374 = vrot.lane.b32.xlu0 %v334, 124
      %v375 = vpop.permute.xlu0 %374
      %376 = vrot.lane.b32.xlu0 %v335, 124
      %v377 = vpop.permute.xlu0 %376
      %378 = vrot.lane.b32.xlu0 %v336, 124
      %v379 = vpop.permute.xlu0 %378
      %380 = vrot.lane.b32.xlu0 %v337, 124
      %v381 = vpop.permute.xlu0 %380
      %382 = vrot.lane.b32.xlu0 %v338, 124
      %v383 = vpop.permute.xlu0 %382
      %384 = vrot.lane.b32.xlu0 %v339, 124
      %v385 = vpop.permute.xlu0 %384
      %386 = vrot.lane.b32.xlu0 %v340, 124
      %v387 = vpop.permute.xlu0 %386
      %388 = vrot.lane.b32.xlu0 %v341, 124
      %v389 = vpop.permute.xlu0 %388
      %v406 = vadd.f32 %v326, %v359
      %v407 = vadd.f32 %v327, %v361
      %v408 = vadd.f32 %v328, %v363
      %v409 = vadd.f32 %v329, %v365
      %v410 = vadd.f32 %v330, %v367
      %v411 = vadd.f32 %v331, %v369
      %v412 = vadd.f32 %v332, %v371
      %v413 = vadd.f32 %v333, %v373
      %v414 = vadd.f32 %v334, %v375
      %v415 = vadd.f32 %v335, %v377
      %v416 = vadd.f32 %v336, %v379
      %v417 = vadd.f32 %v337, %v381
      %v418 = vadd.f32 %v338, %v383
      %v419 = vadd.f32 %v339, %v385
      %v420 = vadd.f32 %v340, %v387
      %v421 = vadd.f32 %v341, %v389
      %v422 = vadd.f32 %v406, %v407
      %v423 = vadd.f32 %v408, %v409
      %v424 = vadd.f32 %v410, %v411
      %v425 = vadd.f32 %v412, %v413
      %v426 = vadd.f32 %v414, %v415
      %v427 = vadd.f32 %v416, %v417
      %v428 = vadd.f32 %v418, %v419
      %v429 = vadd.f32 %v420, %v421
      %v430 = vmul.f32 %v422, 0.25
      %v431 = vmul.f32 %v423, 0.25
      %v432 = vmul.f32 %v424, 0.25
      %v433 = vmul.f32 %v425, 0.25
      %v434 = vmul.f32 %v426, 0.25
      %v435 = vmul.f32 %v427, 0.25
      %v436 = vmul.f32 %v428, 0.25
      %v437 = vmul.f32 %v429, 0.25
      %v438 = vld [vmem:[%s3] sm:$0xf]
      %v439 = vld [vmem:[%s4] sm:$0x1]
      %v441 = vlaneseq
      %v442 = vshrl.u32 %v441, 7
      %v443 = vsub.s32 0, %v442
      %v444 = vrot.slane %v439, %v443
      %vm446 = vcmask 31744
      %v448 = vsel %vm446, %v430, 0
      %v451 = vsel %vm446, %v431, 0
      %v454 = vsel %vm446, %v432, 0
      %v457 = vsel %vm446, %v433, 0
      %v460 = vsel %vm446, %v434, 0
      %v463 = vsel %vm446, %v435, 0
      %v466 = vsel %vm446, %v436, 0
      %v469 = vsel %vm446, %v437, 0
      %vm471 = vcmask 1043456
      %v473 = vsel %vm471, %v438, 0
      %475 = vmatprep.subr.mxu0 0.0
      %476 = vmatpush1.msra.mxu0 %v473
      %477 = vmatprep.subr.mxu0 0.0
      %478 = vmatpush1.msra.mxu0 0.0
      %479 = vmatprep.subr.mxu0 0.0
      %480 = vmatpush1.msra.mxu0 0.0
      %481 = vmatprep.subr.mxu0 0.0
      %482 = vmatpush1.msra.mxu0 0.0
      %483 = vmatprep.subr.mxu0 0.0
      %484 = vmatpush1.msra.mxu0 0.0
      %485 = vmatprep.subr.mxu0 0.0
      %486 = vmatpush1.msra.mxu0 0.0
      %487 = vmatprep.subr.mxu0 0.0
      %488 = vmatpush1.msra.mxu0 0.0
      %489 = vmatprep.subr.mxu0 0.0
      %490 = vmatpush1.msra.mxu0 0.0
      %491 = vmatprep.subr.mxu0 0.0
      %492 = vmatpush1.msra.mxu0 0.0
      %493 = vmatprep.subr.mxu0 0.0
      %494 = vmatpush1.msra.mxu0 0.0
      %495 = vmatprep.subr.mxu0 0.0
      %496 = vmatpush1.msra.mxu0 0.0
      %497 = vmatprep.subr.mxu0 0.0
      %498 = vmatpush1.msra.mxu0 0.0
      %499 = vmatprep.subr.mxu0 0.0
      %500 = vmatpush1.msra.mxu0 0.0
      %501 = vmatprep.subr.mxu0 0.0
      %502 = vmatpush1.msra.mxu0 0.0
      %503 = vmatprep.subr.mxu0 0.0
      %504 = vmatpush1.msra.mxu0 0.0
      %505 = vmatprep.subr.mxu0 0.0
      %506 = vmatpush1.msra.mxu0 0.0
      %507 = vmatprep.subr.mxu0 0.0
      %508 = vmatpush1.msra.mxu0 0.0
      %509 = vmatprep.subr.mxu0 0.0
      %510 = vmatpush1.msra.mxu0 0.0
      %511 = vmatprep.subr.mxu0 0.0
      %512 = vmatpush1.msra.mxu0 0.0
      %513 = vmatprep.subr.mxu0 0.0
      %514 = vmatpush1.msra.mxu0 0.0
      %515 = vmatprep.subr.mxu0 0.0
      %516 = vmatpush1.msra.mxu0 0.0
      %517 = vmatprep.subr.mxu0 0.0
      %518 = vmatpush1.msra.mxu0 0.0
      %519 = vmatprep.subr.mxu0 0.0
      %520 = vmatpush1.msra.mxu0 0.0
      %521 = vmatprep.subr.mxu0 0.0
      %522 = vmatpush1.msra.mxu0 0.0
      %523 = vmatprep.subr.mxu0 0.0
      %524 = vmatpush1.msra.mxu0 0.0
      %525 = vmatprep.subr.mxu0 0.0
      %526 = vmatpush1.msra.mxu0 0.0
      %527 = vmatprep.subr.mxu0 0.0
      %528 = vmatpush1.msra.mxu0 0.0
      %529 = vmatprep.subr.mxu0 0.0
      %530 = vmatpush1.msra.mxu0 0.0
      %531 = vmatprep.subr.mxu0 0.0
      %532 = vmatpush1.msra.mxu0 0.0
      %533 = vmatprep.subr.mxu0 0.0
      %534 = vmatpush1.msra.mxu0 0.0
      %535 = vmatprep.subr.mxu0 0.0
      %536 = vmatpush1.msra.mxu0 0.0
      %537 = vmatprep.subr.mxu0 0.0
      %538 = vmatpush1.msra.mxu0 0.0
      %539 = vmatprep.mubr.f32.mxu0 0.0
      %540 = vmatmul.mubr.f32.gmra.mrb[0].mxu0 %v448
      %v541 = vpop.f32.mrb[0].mxu0
      %v542 = vadd.f32 %v444, %v541
      %v543 = vpop.f32.mrb[0].mxu0
      %544 = vmatprep.mubr.f32.mxu0 0.0
      %545 = vmatmul.mubr.f32.gmra.mrb[0].mxu0 %v451
      %v546 = vpop.f32.mrb[0].mxu0
      %v547 = vadd.f32 %v444, %v546
      %v548 = vpop.f32.mrb[0].mxu0
      %549 = vmatprep.mubr.f32.mxu0 0.0
      %550 = vmatmul.mubr.f32.gmra.mrb[0].mxu0 %v454
      %v551 = vpop.f32.mrb[0].mxu0
      %v552 = vadd.f32 %v444, %v551
      %v553 = vpop.f32.mrb[0].mxu0
      %554 = vmatprep.mubr.f32.mxu0 0.0
      %555 = vmatmul.mubr.f32.gmra.mrb[0].mxu0 %v457
      %v556 = vpop.f32.mrb[0].mxu0
      %v557 = vadd.f32 %v444, %v556
      %v558 = vpop.f32.mrb[0].mxu0
      %559 = vmatprep.mubr.f32.mxu0 0.0
      %560 = vmatmul.mubr.f32.gmra.mrb[0].mxu0 %v460
      %v561 = vpop.f32.mrb[0].mxu0
      %v562 = vadd.f32 %v444, %v561
      %v563 = vpop.f32.mrb[0].mxu0
      %564 = vmatprep.mubr.f32.mxu0 0.0
      %565 = vmatmul.mubr.f32.gmra.mrb[0].mxu0 %v463
      %v566 = vpop.f32.mrb[0].mxu0
      %v567 = vadd.f32 %v444, %v566
      %v568 = vpop.f32.mrb[0].mxu0
      %569 = vmatprep.mubr.f32.mxu0 0.0
      %570 = vmatmul.mubr.f32.gmra.mrb[0].mxu0 %v466
      %v571 = vpop.f32.mrb[0].mxu0
      %v572 = vadd.f32 %v444, %v571
      %v573 = vpop.f32.mrb[0].mxu0
      %574 = vmatprep.mubr.f32.mxu0 0.0
      %575 = vmatmul.mubr.f32.gmra.mrb[0].mxu0 %v469
      %v576 = vpop.f32.mrb[0].mxu0
      %v577 = vadd.f32 %v444, %v576
      %v578 = vpop.f32.mrb[0].mxu0
      %579 = vdwg.mxu0
      %580 = vst [vmem:[%s262] sm:$0xff] %v542
      %581 = vst [vmem:[%s262 + $0x8] sm:$0xff] %v547
      %582 = vst [vmem:[%s262 + $0x10] sm:$0xff] %v552
      %583 = vst [vmem:[%s262 + $0x18] sm:$0xff] %v557
      %584 = vst [vmem:[%s262 + $0x20] sm:$0xff] %v562
      %585 = vst [vmem:[%s262 + $0x28] sm:$0xff] %v567
      %586 = vst [vmem:[%s262 + $0x30] sm:$0xff] %v572
      %587 = vst [vmem:[%s262 + $0x38] sm:$0xff] %v577
      %s588 = smul.u32 8, %s21
      %p589 = scmp.lt.s32.totalorder %s20, 1
      %s590 = scalar_select %p589, %s20, 1
      %p591 = scmp.lt.s32.totalorder %s588, 7
      %s592 = scalar_select %p591, %s588, 7
      %s593 = smul.addr %s590, 8
      %s594 = sadd.s32 %s592, %s593
      %s595 = smul.addr %s594, 8
      %s596 = scalar_lea.vmem %s5, %s595
      // Predicated region
      $region41: #{transition_block_forward.3} parent=39 // pred_check
        %p597 = pneg %p160
      $region42: #{transition_block_forward.3} parent=39 // pred_check_branch
        %599 = sbr.rel (%p597) target = $region44
      $region43: #{transition_block_forward.3} parent=39 // pred_region
        %s600 = smul.u32 8, %s21
      $region44: #{transition_block_forward.3} parent=39 // pred_fallthru
        _
    $region40: #{transition_block_forward.3} parent=5 // pred_fallthru
      _
    %p601 = scmp.le.s32.totalorder 2, %s11
    // Predicated region
    $region45: #{transition_block_forward.3} parent=5 // pred_check
      %p602 = pneg %p601
    $region46: #{transition_block_forward.3} parent=5 // pred_check_branch
      %604 = sbr.rel (%p602) target = $region48
    $region47: #{transition_block_forward.3} parent=5 // pred_region
      %s605 = ssub.s32 %s11, 2
      // Predicated region
      $region49: #{transition_block_forward.3} parent=47 // pred_check
        %p606 = pneg %p166
      $region50: #{transition_block_forward.3} parent=47 // pred_check_branch
        %608 = sbr.rel (%p606) target = $region52
      $region51: #{transition_block_forward.3} parent=47 // pred_region
        %s609 = smul.u32 8, %s23
        %p610 = scmp.lt.s32.totalorder %s22, 1
        %s611 = scalar_select %p610, %s22, 1
        %p612 = scmp.lt.s32.totalorder %s609, 7
        %s613 = scalar_select %p612, %s609, 7
        %s614 = smul.addr %s611, 8
        %s615 = sadd.s32 %s613, %s614
        %s616 = smul.addr %s615, 8
        %s617 = scalar_lea.vmem %s5, %s616
      $region52: #{transition_block_forward.3} parent=47 // pred_fallthru
        _
    $region48: #{transition_block_forward.3} parent=5 // pred_fallthru
      _
  $region6: #{transition_block_forward.3} parent=0 // loop_footer
    %s15 = sadd.s32 1, %s11
  $region7: #{transition_block_forward.3} parent=0 // loop_footer_branch
    %10 = sbr.rel target = $region3
  $region8: #{transition_block_forward.3} parent=0 // loop_exit
    _

</llo_original>
